<compile_context>
chip_gen: v6e
topology: v6e:2x2x1
jax: 0.10.0
libtpu: 0.0.40
codegen_flags: <defaults>
</compile_context>

<pallas_src>
import jax
import jax.numpy as jnp
from jax import lax
from jax.experimental import pallas as pl
from jax.experimental.pallas import tpu as pltpu

DP = 128  # lane-dense (padded) feature width


def fused_gine_kernel(x_ref, ea_ref, s_ref, t_ref,
                      w1_ref, b1_ref, w2_ref, b2_ref, eps1_ref, drop_ref,
                      o_ref, agg_scr):
    l = pl.program_id(0)

    # --- layer-invariant aggregation: compute once, keep in VMEM scratch ---
    @pl.when(l == 0)
    def _():
        # gather source-node features per edge: (E, N) @ (N, DP) -> (E, DP)
        xj = jnp.dot(s_ref[...], x_ref[...], preferred_element_type=jnp.float32)
        # GINEConv message: relu(x_j + edge_attr)
        msg = jnp.maximum(xj + ea_ref[...], 0.0)                    # (E, DP)
        # scatter-add to destination nodes: contract edge axis of T (E, N)
        # with msg (E, DP) -> (N, DP); MXU handles the transposed contraction.
        agg_scr[...] = lax.dot_general(
            t_ref[...], msg,
            dimension_numbers=(((0,), (0,)), ((), ())),
            preferred_element_type=jnp.float32)

    # --- per-layer update (original x every layer, per the module's forward) ---
    x = x_ref[...]                                                  # (N, DP)
    h = eps1_ref[0] * x + agg_scr[...]                              # (1+eps)*x + agg
    # MLP: Linear -> ReLU -> Linear (weights pre-transposed to (in, out))
    h1 = jnp.maximum(
        jnp.dot(h, w1_ref[0], preferred_element_type=jnp.float32) + b1_ref[0],
        0.0)
    out = jnp.dot(h1, w2_ref[0], preferred_element_type=jnp.float32) + b2_ref[0]
    # outer relu + dropout(p=0.5, train=True); drop_ref holds 0.0 / 2.0 scales.
    o_ref[...] = jnp.maximum(out, 0.0) * drop_ref[0]


def init_params(key, num_layers, dim):
    params = []
    for _ in range(num_layers):
        key, k1, k2, k3, k4 = jax.random.split(key, 5)
        w1 = 0.1 * jax.random.normal(k1, (dim, dim), jnp.float32)   # torch Linear: (out, in)
        b1 = 0.1 * jax.random.normal(k2, (dim,), jnp.float32)
        w2 = 0.1 * jax.random.normal(k3, (dim, dim), jnp.float32)
        b2 = 0.1 * jax.random.normal(k4, (dim,), jnp.float32)
        eps = jnp.zeros((1,), jnp.float32)                          # GINEConv eps init = 0
        params.append((w1, b1, w2, b2, eps))
    return params


def gnn_forward(x, edge_index, edge_attr, params, dropout_key):
    """Reproduces GNNModule.forward (training=True) with one fused Pallas call."""
    N, D = x.shape
    E = edge_index.shape[1]
    L = len(params)

    # --- glue (plain JAX, layout only): pad features to 128 lanes, one-hots ---
    xp = jnp.zeros((N, DP), jnp.float32).at[:, :D].set(x)
    eap = jnp.zeros((E, DP), jnp.float32).at[:, :D].set(edge_attr)
    src, dst = edge_index[0], edge_index[1]
    S = jax.nn.one_hot(src, N, dtype=jnp.float32)        # (E, N) gather
    T = jax.nn.one_hot(dst, N, dtype=jnp.float32)        # (E, N) scatter (contracted over E)

    # stack per-layer params to (L, ...), zero-padded to DP, weights pre-transposed
    w1s, b1s, w2s, b2s, eps1s = [], [], [], [], []
    for (w1, b1, w2, b2, eps) in params:
        w1s.append(jnp.zeros((DP, DP), jnp.float32).at[:D, :D].set(w1.T))
        b1s.append(jnp.zeros((1, DP), jnp.float32).at[0, :D].set(b1))
        w2s.append(jnp.zeros((DP, DP), jnp.float32).at[:D, :D].set(w2.T))
        b2s.append(jnp.zeros((1, DP), jnp.float32).at[0, :D].set(b2))
        eps1s.append(jnp.full((1, DP), 1.0 + eps[0], jnp.float32))
    W1, B1 = jnp.stack(w1s), jnp.stack(b1s)              # (L, DP, DP), (L, 1, DP)
    W2, B2 = jnp.stack(w2s), jnp.stack(b2s)
    EPS1 = jnp.stack(eps1s)                              # (L, 1, DP)

    # dropout(p=0.5) keep/scale mask, fresh per forward call
    keep = jax.random.bernoulli(dropout_key, 0.5, (L, N, DP))
    DROP = keep.astype(jnp.float32) * 2.0                # (L, N, DP) of {0.0, 2.0}

    out = pl.pallas_call(
        fused_gine_kernel,
        out_shape=jax.ShapeDtypeStruct((N, DP), jnp.float32),
        grid_spec=pltpu.PrefetchScalarGridSpec(
            num_scalar_prefetch=0,
            grid=(L,),
            in_specs=[
                pl.BlockSpec((N, DP), lambda l: (0, 0)),          # x        (resident)
                pl.BlockSpec((E, DP), lambda l: (0, 0)),          # edge_attr(resident)
                pl.BlockSpec((E, N), lambda l: (0, 0)),           # S        (resident)
                pl.BlockSpec((E, N), lambda l: (0, 0)),           # T        (resident)
                pl.BlockSpec((1, DP, DP), lambda l: (l, 0, 0)),   # W1[l]
                pl.BlockSpec((1, 1, DP), lambda l: (l, 0, 0)),    # b1[l]
                pl.BlockSpec((1, DP, DP), lambda l: (l, 0, 0)),   # W2[l]
                pl.BlockSpec((1, 1, DP), lambda l: (l, 0, 0)),    # b2[l]
                pl.BlockSpec((1, 1, DP), lambda l: (l, 0, 0)),    # 1+eps[l]
                pl.BlockSpec((1, N, DP), lambda l: (l, 0, 0)),    # dropout scale[l]
            ],
            out_specs=pl.BlockSpec((N, DP), lambda l: (0, 0)),    # revisited; final layer wins
            scratch_shapes=[pltpu.VMEM((N, DP), jnp.float32)],    # persistent agg
        ),
        compiler_params=pltpu.CompilerParams(
            dimension_semantics=("arbitrary",)),
    )(xp, eap, S, T, W1, B1, W2, B2, EPS1, DROP)

    return out[:, :D]


def _reference(x, edge_index, edge_attr, params, drop_scale):
    """Pure-JAX reference with the identical dropout mask (for a silent check)."""
    N, D = x.shape
    src, dst = edge_index[0], edge_index[1]
    out = x
    for li, (w1, b1, w2, b2, eps) in enumerate(params):
        xj = x[src]                                             # (E, D)
        msg = jnp.maximum(xj + edge_attr, 0.0)
        agg = jnp.zeros((N, D), jnp.float32).at[dst].add(msg)
        h = (1.0 + eps[0]) * x + agg
        h1 = jnp.maximum(h @ w1.T + b1, 0.0)
        y = jnp.maximum(h1 @ w2.T + b2, 0.0)
        out = y * drop_scale[li, :, :D]
    return out


if __name__ == "__main__":
    N, E, D, L = 16, 32, 32, 5
    key = jax.random.PRNGKey(0)
    key, kx, ks, kd, ke, kp, kdrop = jax.random.split(key, 7)

    x = jax.random.normal(kx, (N, D), jnp.float32)
    src = jax.random.randint(ks, (E,), 0, N, jnp.int32)
    dst = jax.random.randint(kd, (E,), 0, N, jnp.int32)
    edge_index = jnp.stack([src, dst], axis=0)                 # (2, E)
    edge_attr = jax.random.normal(ke, (E, D), jnp.float32)

    params = init_params(kp, L, D)

    y = gnn_forward(x, edge_index, edge_attr, params, kdrop)
    jax.block_until_ready(y)
    assert y.shape == (N, D) and y.dtype == jnp.float32

    # silent correctness check against a pure-JAX reference (same dropout mask)
    keep = jax.random.bernoulli(kdrop, 0.5, (L, N, DP))
    y_ref = _reference(x, edge_index, edge_attr, params, keep.astype(jnp.float32) * 2.0)
    assert jnp.allclose(y, y_ref, rtol=1e-4, atol=1e-4)

    print("KERNEL_OK")
</pallas_src>

<mosaic_0001>
module attributes {stable_mosaic.version = 11 : i64} {
  func.func @fused_gine_kernel(%arg0: i32, %arg1: memref<16x128xf32, #tpu.memory_space<vmem>>, %arg2: memref<32x128xf32, #tpu.memory_space<vmem>>, %arg3: memref<32x16xf32, #tpu.memory_space<vmem>>, %arg4: memref<32x16xf32, #tpu.memory_space<vmem>>, %arg5: memref<1x128x128xf32, #tpu.memory_space<vmem>>, %arg6: memref<1x1x128xf32, #tpu.memory_space<vmem>>, %arg7: memref<1x128x128xf32, #tpu.memory_space<vmem>>, %arg8: memref<1x1x128xf32, #tpu.memory_space<vmem>>, %arg9: memref<1x1x128xf32, #tpu.memory_space<vmem>>, %arg10: memref<1x16x128xf32, #tpu.memory_space<vmem>>, %arg11: memref<16x128xf32, #tpu.memory_space<vmem>>, %arg12: memref<16x128xf32, #tpu.memory_space<vmem>>) attributes {dimension_semantics = [#tpu.dimension_semantics<arbitrary>], iteration_bounds = array<i64: 5>, scalar_prefetch = 0 : i64, scratch_operands = 1 : i64, tpu.core_type = #tpu.core_type<tc>, window_params = [{pipeline_mode = #tpu.pipeline_mode<synchronous>, transform_indices = @transform_0, window_bounds = array<i64: 16, 128>}, {pipeline_mode = #tpu.pipeline_mode<synchronous>, transform_indices = @transform_1, window_bounds = array<i64: 32, 128>}, {pipeline_mode = #tpu.pipeline_mode<synchronous>, transform_indices = @transform_2, window_bounds = array<i64: 32, 16>}, {pipeline_mode = #tpu.pipeline_mode<synchronous>, transform_indices = @transform_3, window_bounds = array<i64: 32, 16>}, {transform_indices = @transform_4, window_bounds = array<i64: 1, 128, 128>}, {transform_indices = @transform_5, window_bounds = array<i64: 1, 1, 128>}, {transform_indices = @transform_6, window_bounds = array<i64: 1, 128, 128>}, {transform_indices = @transform_7, window_bounds = array<i64: 1, 1, 128>}, {transform_indices = @transform_8, window_bounds = array<i64: 1, 1, 128>}, {transform_indices = @transform_9, window_bounds = array<i64: 1, 16, 128>}, {pipeline_mode = #tpu.pipeline_mode<synchronous>, transform_indices = @transform_10, window_bounds = array<i64: 16, 128>}]} {
    %c0_i32 = arith.constant 0 : i32
    %0 = arith.cmpi eq, %arg0, %c0_i32 : i32
    %1 = arith.extui %0 : i1 to i32
    %c0_i32_0 = arith.constant 0 : i32
    %2 = arith.cmpi ne, %1, %c0_i32_0 : i32
    scf.if %2 {
      %c0_27 = arith.constant 0 : index
      %c0_28 = arith.constant 0 : index
      %32 = vector.load %arg3[%c0_27, %c0_28] : memref<32x16xf32, #tpu.memory_space<vmem>>, vector<32x16xf32>
      %c0_29 = arith.constant 0 : index
      %c0_30 = arith.constant 0 : index
      %33 = vector.load %arg1[%c0_29, %c0_30] : memref<16x128xf32, #tpu.memory_space<vmem>>, vector<16x128xf32>
      %cst_31 = arith.constant dense<0.000000e+00> : vector<32x128xf32>
      %34 = tpu.matmul %32, %33, %cst_31 {dimension_numbers = #tpu.dot_dimension_numbers<[1], [0], [0], [1], [0, 0, 1, 1], [], []>} : vector<32x16xf32>, vector<16x128xf32>, vector<32x128xf32> -> vector<32x128xf32>
      %c0_32 = arith.constant 0 : index
      %c0_33 = arith.constant 0 : index
      %35 = vector.load %arg2[%c0_32, %c0_33] : memref<32x128xf32, #tpu.memory_space<vmem>>, vector<32x128xf32>
      %36 = arith.addf %34, %35 : vector<32x128xf32>
      %cst_34 = arith.constant 0.000000e+00 : f32
      %37 = vector.broadcast %cst_34 : f32 to vector<32x128xf32>
      %38 = arith.maximumf %36, %37 : vector<32x128xf32>
      %c0_35 = arith.constant 0 : index
      %c0_36 = arith.constant 0 : index
      %39 = vector.load %arg4[%c0_35, %c0_36] : memref<32x16xf32, #tpu.memory_space<vmem>>, vector<32x16xf32>
      %cst_37 = arith.constant dense<0.000000e+00> : vector<16x128xf32>
      %40 = tpu.matmul %39, %38, %cst_37 {dimension_numbers = #tpu.dot_dimension_numbers<[0], [0], [1], [1], [0, 1, 1, 1], [], []>} : vector<32x16xf32>, vector<32x128xf32>, vector<16x128xf32> -> vector<16x128xf32>
      %c0_38 = arith.constant 0 : index
      %c0_39 = arith.constant 0 : index
      %41 = vector.load %arg12[%c0_38, %c0_39] : memref<16x128xf32, #tpu.memory_space<vmem>>, vector<16x128xf32>
      tpu.vector_store %arg12[%c0_38, %c0_39], %40 {strides = array<i32>} : memref<16x128xf32, #tpu.memory_space<vmem>>, vector<16x128xf32>,
    } else {
    }
    %c0 = arith.constant 0 : index
    %c0_1 = arith.constant 0 : index
    %3 = vector.load %arg1[%c0, %c0_1] : memref<16x128xf32, #tpu.memory_space<vmem>>, vector<16x128xf32>
    %c0_2 = arith.constant 0 : index
    %c0_3 = arith.constant 0 : index
    %c0_4 = arith.constant 0 : index
    %4 = vector.load %arg9[%c0_2, %c0_3, %c0_4] : memref<1x1x128xf32, #tpu.memory_space<vmem>>, vector<1x1x128xf32>
    %5 = vector.shape_cast %4 : vector<1x1x128xf32> to vector<1x128xf32>
    %6 = vector.broadcast %5 : vector<1x128xf32> to vector<16x128xf32>
    %7 = arith.mulf %6, %3 : vector<16x128xf32>
    %c0_5 = arith.constant 0 : index
    %c0_6 = arith.constant 0 : index
    %8 = vector.load %arg12[%c0_5, %c0_6] : memref<16x128xf32, #tpu.memory_space<vmem>>, vector<16x128xf32>
    %9 = arith.addf %7, %8 : vector<16x128xf32>
    %c0_7 = arith.constant 0 : index
    %c0_8 = arith.constant 0 : index
    %c0_9 = arith.constant 0 : index
    %10 = vector.load %arg5[%c0_7, %c0_8, %c0_9] : memref<1x128x128xf32, #tpu.memory_space<vmem>>, vector<1x128x128xf32>
    %11 = vector.shape_cast %10 : vector<1x128x128xf32> to vector<128x128xf32>
    %cst = arith.constant dense<0.000000e+00> : vector<16x128xf32>
    %12 = tpu.matmul %9, %11, %cst {dimension_numbers = #tpu.dot_dimension_numbers<[1], [0], [0], [1], [0, 0, 1, 1], [], []>} : vector<16x128xf32>, vector<128x128xf32>, vector<16x128xf32> -> vector<16x128xf32>
    %c0_10 = arith.constant 0 : index
    %c0_11 = arith.constant 0 : index
    %c0_12 = arith.constant 0 : index
    %13 = vector.load %arg6[%c0_10, %c0_11, %c0_12] : memref<1x1x128xf32, #tpu.memory_space<vmem>>, vector<1x1x128xf32>
    %14 = vector.shape_cast %13 : vector<1x1x128xf32> to vector<1x128xf32>
    %15 = vector.broadcast %14 : vector<1x128xf32> to vector<16x128xf32>
    %16 = arith.addf %12, %15 : vector<16x128xf32>
    %cst_13 = arith.constant 0.000000e+00 : f32
    %17 = vector.broadcast %cst_13 : f32 to vector<16x128xf32>
    %18 = arith.maximumf %16, %17 : vector<16x128xf32>
    %c0_14 = arith.constant 0 : index
    %c0_15 = arith.constant 0 : index
    %c0_16 = arith.constant 0 : index
    %19 = vector.load %arg7[%c0_14, %c0_15, %c0_16] : memref<1x128x128xf32, #tpu.memory_space<vmem>>, vector<1x128x128xf32>
    %20 = vector.shape_cast %19 : vector<1x128x128xf32> to vector<128x128xf32>
    %cst_17 = arith.constant dense<0.000000e+00> : vector<16x128xf32>
    %21 = tpu.matmul %18, %20, %cst_17 {dimension_numbers = #tpu.dot_dimension_numbers<[1], [0], [0], [1], [0, 0, 1, 1], [], []>} : vector<16x128xf32>, vector<128x128xf32>, vector<16x128xf32> -> vector<16x128xf32>
    %c0_18 = arith.constant 0 : index
    %c0_19 = arith.constant 0 : index
    %c0_20 = arith.constant 0 : index
    %22 = vector.load %arg8[%c0_18, %c0_19, %c0_20] : memref<1x1x128xf32, #tpu.memory_space<vmem>>, vector<1x1x128xf32>
    %23 = vector.shape_cast %22 : vector<1x1x128xf32> to vector<1x128xf32>
    %24 = vector.broadcast %23 : vector<1x128xf32> to vector<16x128xf32>
    %25 = arith.addf %21, %24 : vector<16x128xf32>
    %cst_21 = arith.constant 0.000000e+00 : f32
    %26 = vector.broadcast %cst_21 : f32 to vector<16x128xf32>
    %27 = arith.maximumf %25, %26 : vector<16x128xf32>
    %c0_22 = arith.constant 0 : index
    %c0_23 = arith.constant 0 : index
    %c0_24 = arith.constant 0 : index
    %28 = vector.load %arg10[%c0_22, %c0_23, %c0_24] : memref<1x16x128xf32, #tpu.memory_space<vmem>>, vector<1x16x128xf32>
    %29 = vector.shape_cast %28 : vector<1x16x128xf32> to vector<16x128xf32>
    %30 = arith.mulf %27, %29 : vector<16x128xf32>
    %c0_25 = arith.constant 0 : index
    %c0_26 = arith.constant 0 : index
    %31 = vector.load %arg11[%c0_25, %c0_26] : memref<16x128xf32, #tpu.memory_space<vmem>>, vector<16x128xf32>
    tpu.vector_store %arg11[%c0_25, %c0_26], %30 {strides = array<i32>} : memref<16x128xf32, #tpu.memory_space<vmem>>, vector<16x128xf32>,
    return
  }
  func.func @transform_0(%arg0: i32) -> (i32, i32) {
    %c0_i32 = arith.constant 0 : i32
    %c0_i32_0 = arith.constant 0 : i32
    %c0_i32_1 = arith.constant 0 : i32
    return %c0_i32, %c0_i32_0 : i32, i32
  }
  func.func @transform_1(%arg0: i32) -> (i32, i32) {
    %c0_i32 = arith.constant 0 : i32
    %c0_i32_0 = arith.constant 0 : i32
    %c0_i32_1 = arith.constant 0 : i32
    return %c0_i32, %c0_i32_0 : i32, i32
  }
  func.func @transform_2(%arg0: i32) -> (i32, i32) {
    %c0_i32 = arith.constant 0 : i32
    %c0_i32_0 = arith.constant 0 : i32
    %c0_i32_1 = arith.constant 0 : i32
    return %c0_i32, %c0_i32_0 : i32, i32
  }
  func.func @transform_3(%arg0: i32) -> (i32, i32) {
    %c0_i32 = arith.constant 0 : i32
    %c0_i32_0 = arith.constant 0 : i32
    %c0_i32_1 = arith.constant 0 : i32
    return %c0_i32, %c0_i32_0 : i32, i32
  }
  func.func @transform_4(%arg0: i32) -> (i32, i32, i32) {
    %c0_i32 = arith.constant 0 : i32
    %c0_i32_0 = arith.constant 0 : i32
    %c0_i32_1 = arith.constant 0 : i32
    return %arg0, %c0_i32, %c0_i32_0 : i32, i32, i32
  }
  func.func @transform_5(%arg0: i32) -> (i32, i32, i32) {
    %c0_i32 = arith.constant 0 : i32
    %c0_i32_0 = arith.constant 0 : i32
    %c0_i32_1 = arith.constant 0 : i32
    return %arg0, %c0_i32, %c0_i32_0 : i32, i32, i32
  }
  func.func @transform_6(%arg0: i32) -> (i32, i32, i32) {
    %c0_i32 = arith.constant 0 : i32
    %c0_i32_0 = arith.constant 0 : i32
    %c0_i32_1 = arith.constant 0 : i32
    return %arg0, %c0_i32, %c0_i32_0 : i32, i32, i32
  }
  func.func @transform_7(%arg0: i32) -> (i32, i32, i32) {
    %c0_i32 = arith.constant 0 : i32
    %c0_i32_0 = arith.constant 0 : i32
    %c0_i32_1 = arith.constant 0 : i32
    return %arg0, %c0_i32, %c0_i32_0 : i32, i32, i32
  }
  func.func @transform_8(%arg0: i32) -> (i32, i32, i32) {
    %c0_i32 = arith.constant 0 : i32
    %c0_i32_0 = arith.constant 0 : i32
    %c0_i32_1 = arith.constant 0 : i32
    return %arg0, %c0_i32, %c0_i32_0 : i32, i32, i32
  }
  func.func @transform_9(%arg0: i32) -> (i32, i32, i32) {
    %c0_i32 = arith.constant 0 : i32
    %c0_i32_0 = arith.constant 0 : i32
    %c0_i32_1 = arith.constant 0 : i32
    return %arg0, %c0_i32, %c0_i32_0 : i32, i32, i32
  }
  func.func @transform_10(%arg0: i32) -> (i32, i32) {
    %c0_i32 = arith.constant 0 : i32
    %c0_i32_0 = arith.constant 0 : i32
    %c0_i32_1 = arith.constant 0 : i32
    return %c0_i32, %c0_i32_0 : i32, i32
  }
}

</mosaic_0001>

<llo_original>
// kernel: tpu_custom_call.1
$region0: #{tpu_custom_call.1}
  #allocation0 [shape = 'u32[]', space=smem, size = 0x4, offset = 0x4, fixed_abs, tag = 'smem constant byte address 0x4 - core index']
  #allocation1 [shape = 'u32[144,128]{1,0:T(1,128)}', space=vmem, size = 0x12000, scoped, tag = 'internal scratch']
  #allocation2 [shape = 'f32[16,128]{1,0:T(8,128)}', space=vmem, size = 0x2000, scoped, tag = 'scratch operand']
  %s0 = inlined_call_operand.hbm [shape: f32[16,128], index: 0, kind: input, shape index: {}]
  %s1 = inlined_call_operand.vmem [shape: f32[32,128], index: 1, kind: input, shape index: {}]
  %s2 = inlined_call_operand.vmem [shape: f32[32,16], index: 2, kind: input, shape index: {}]
  %s3 = inlined_call_operand.vmem [shape: f32[32,16], index: 3, kind: input, shape index: {}]
  %s4 = inlined_call_operand.hbm [shape: f32[5,128,128], index: 4, kind: input, shape index: {}]
  %s5 = inlined_call_operand.hbm [shape: f32[5,1,128], index: 5, kind: input, shape index: {}]
  %s6 = inlined_call_operand.hbm [shape: f32[5,128,128], index: 6, kind: input, shape index: {}]
  %s7 = inlined_call_operand.hbm [shape: f32[5,1,128], index: 7, kind: input, shape index: {}]
  %s8 = inlined_call_operand.hbm [shape: f32[5,1,128], index: 8, kind: input, shape index: {}]
  %s9 = inlined_call_operand.vmem [shape: f32[5,16,128], index: 9, kind: input, shape index: {}]
  %s10 = inlined_call_operand.hbm [shape: f32[16,128], index: 10, kind: output, shape index: {}]
  %s11 = sld [smem:[#allocation0]]
  $region101: #{tpu_custom_call.1} parent=0
    _
  %s13 = ssub.s32 1, %s11
  %s14 = scalar_select 0, %s13, %s11
  $region1: #{tpu_custom_call.1} parent=0
    #allocation3 [shape = 'u8[8192]{0}', space=vmem, size = 0x2000, scoped, tag = 'input window, operand 0, single buffered']
    #allocation4 [shape = 's32[2]{0}', space=sflag, size = 0x8, scoped, tag = 'scoped memory for tpu_custom_call.1']
    #allocation5 [shape = 's32[2]{0}', space=sflag, size = 0x8, scoped, tag = 'scoped memory for tpu_custom_call.1']
    #allocation6 [shape = 'u8[131072]{0}', space=vmem, size = 0x20000, scoped, tag = 'input window, operand 4']
    #allocation7 [shape = 's32[2]{0}', space=sflag, size = 0x8, scoped, tag = 'scoped memory for tpu_custom_call.1']
    #allocation8 [shape = 'u8[1024]{0}', space=vmem, size = 0x400, scoped, tag = 'input window, operand 5']
    #allocation9 [shape = 'u8[131072]{0}', space=vmem, size = 0x20000, scoped, tag = 'input window, operand 6']
    #allocation10 [shape = 's32[2]{0}', space=sflag, size = 0x8, scoped, tag = 'scoped memory for tpu_custom_call.1']
    #allocation11 [shape = 'u8[1024]{0}', space=vmem, size = 0x400, scoped, tag = 'input window, operand 7']
    #allocation12 [shape = 'u8[1024]{0}', space=vmem, size = 0x400, scoped, tag = 'input window, operand 8']
    #allocation13 [shape = 's32[2]{0}', space=sflag, size = 0x8, scoped, tag = 'scoped memory for tpu_custom_call.1']
    #allocation14 [shape = 'u8[8192]{0}', space=vmem, size = 0x2000, scoped, tag = 'output window, operand 0, single buffered']
    %15 = vsyncpa [#allocation4], 0
    %16 = vsyncpa [#allocation7], 0
    %s17 = scalar_lea.sflag [#allocation7], 1
    %18 = vsyncpa %s17, 0
    %19 = vsyncpa [#allocation10], 0
    %s20 = scalar_lea.sflag [#allocation10], 1
    %21 = vsyncpa %s20, 0
    %22 = vsyncpa [#allocation13], 0
    %s23 = scalar_lea.sflag [#allocation13], 1
    %24 = vsyncpa %s23, 0
    %25 = vsyncpa [#allocation5], 0
    loop: start=0, step=1, limit=7
    $region2: #{tpu_custom_call.1} parent=1 // loop_pre_header
      _
    $region3: #{tpu_custom_call.1} parent=1 // loop_header
      %s27 = sphi 0, %s31
      %p28 = scmp.ge.s32.totalorder %s27, 7
      %s35 = sphi 0, %s35
      %s37 = sphi 0, %s35
      %s38 = sphi 0, %s37
      %s52 = sphi 0, %s38
      %s56 = sphi 0, %s56
      %s58 = sphi 0, %s56
      %s59 = sphi 0, %s58
      %s73 = sphi 0, %s59
      %s77 = sphi 0, %s77
      %s79 = sphi 0, %s77
      %s80 = sphi 0, %s79
      %s94 = sphi 0, %s80
      %s98 = sphi 0, %s98
      %s100 = sphi 0, %s98
      %s101 = sphi 0, %s100
      %s115 = sphi 0, %s101
      %s121 = sphi 0, %s123
      %s124 = sphi 0, %s121
      %s125 = sphi 0, %s124
      %s141 = sphi 0, %s125
      %s147 = sphi 0, %s149
      %s150 = sphi 0, %s147
      %s151 = sphi 0, %s150
      %s167 = sphi 0, %s151
      %s173 = sphi 0, %s175
      %s176 = sphi 0, %s173
      %s177 = sphi 0, %s176
      %s193 = sphi 0, %s177
      %s199 = sphi 0, %s201
      %s202 = sphi 0, %s199
      %s203 = sphi 0, %s202
      %s219 = sphi 0, %s203
      %s225 = sphi 0, %s227
      %s228 = sphi 0, %s225
      %s229 = sphi 0, %s228
      %s245 = sphi 0, %s229
      %s251 = sphi 0, %s253
      %s254 = sphi 0, %s251
      %s255 = sphi 0, %s254
      %s271 = sphi 0, %s255
      %s275 = sphi 0, %s275
      %s277 = sphi 0, %s275
      %s278 = sphi 0, %s277
      %s292 = sphi 0, %s278
    $region4: #{tpu_custom_call.1} parent=1 // loop_header_branch
      %30 = sbr.rel (%p28) target = $region8
    $region5: #{tpu_custom_call.1} parent=1 // loop_body
      %s32 = ssub.s32 %s27, 1
      %s33 = ssub.s32 %s27, 2
      %s34 = sadd.s32 %s27, 1
      %s36 = sadd.s32 %s35, 1
      %p39 = scmp.eq.s32.totalorder %s27, 4
      %p40 = scmp.ne.s32.totalorder %s35, %s37
      %p41 = scmp.eq.s32.totalorder %s27, 0
      %p42 = por %p40, %p41
      %p43 = scmp.ne.s32.totalorder %s35, %s37
      %p44 = scmp.eq.s32.totalorder %s32, 4
      %p45 = por %p43, %p44
      %p46 = scmp.ne.s32.totalorder %s37, %s38
      %p47 = scmp.eq.s32.totalorder %s32, 0
      %p48 = por %p46, %p47
      %p49 = scmp.ne.s32.totalorder %s37, %s38
      %p50 = scmp.eq.s32.totalorder %s33, 4
      %p51 = por %p49, %p50
      %p53 = scmp.ne.s32.totalorder %s38, %s52
      %p54 = scmp.eq.s32.totalorder %s33, 0
      %p55 = por %p53, %p54
      %s57 = sadd.s32 %s56, 1
      %p60 = scmp.eq.s32.totalorder %s27, 4
      %p61 = scmp.ne.s32.totalorder %s56, %s58
      %p62 = scmp.eq.s32.totalorder %s27, 0
      %p63 = por %p61, %p62
      %p64 = scmp.ne.s32.totalorder %s56, %s58
      %p65 = scmp.eq.s32.totalorder %s32, 4
      %p66 = por %p64, %p65
      %p67 = scmp.ne.s32.totalorder %s58, %s59
      %p68 = scmp.eq.s32.totalorder %s32, 0
      %p69 = por %p67, %p68
      %p70 = scmp.ne.s32.totalorder %s58, %s59
      %p71 = scmp.eq.s32.totalorder %s33, 4
      %p72 = por %p70, %p71
      %p74 = scmp.ne.s32.totalorder %s59, %s73
      %p75 = scmp.eq.s32.totalorder %s33, 0
      %p76 = por %p74, %p75
      %s78 = sadd.s32 %s77, 1
      %p81 = scmp.eq.s32.totalorder %s27, 4
      %p82 = scmp.ne.s32.totalorder %s77, %s79
      %p83 = scmp.eq.s32.totalorder %s27, 0
      %p84 = por %p82, %p83
      %p85 = scmp.ne.s32.totalorder %s77, %s79
      %p86 = scmp.eq.s32.totalorder %s32, 4
      %p87 = por %p85, %p86
      %p88 = scmp.ne.s32.totalorder %s79, %s80
      %p89 = scmp.eq.s32.totalorder %s32, 0
      %p90 = por %p88, %p89
      %p91 = scmp.ne.s32.totalorder %s79, %s80
      %p92 = scmp.eq.s32.totalorder %s33, 4
      %p93 = por %p91, %p92
      %p95 = scmp.ne.s32.totalorder %s80, %s94
      %p96 = scmp.eq.s32.totalorder %s33, 0
      %p97 = por %p95, %p96
      %s99 = sadd.s32 %s98, 1
      %p102 = scmp.eq.s32.totalorder %s27, 4
      %p103 = scmp.ne.s32.totalorder %s98, %s100
      %p104 = scmp.eq.s32.totalorder %s27, 0
      %p105 = por %p103, %p104
      %p106 = scmp.ne.s32.totalorder %s98, %s100
      %p107 = scmp.eq.s32.totalorder %s32, 4
      %p108 = por %p106, %p107
      %p109 = scmp.ne.s32.totalorder %s100, %s101
      %p110 = scmp.eq.s32.totalorder %s32, 0
      %p111 = por %p109, %p110
      %p112 = scmp.ne.s32.totalorder %s100, %s101
      %p113 = scmp.eq.s32.totalorder %s33, 4
      %p114 = por %p112, %p113
      %p116 = scmp.ne.s32.totalorder %s101, %s115
      %p117 = scmp.eq.s32.totalorder %s33, 0
      %p118 = por %p116, %p117
      %s119 = ssub.s32 %s27, %s34
      %p120 = scmp.eq.s32.totalorder %s119, 0
      %s122 = sadd.s32 %s121, 1
      %s123 = scalar_select %p120, %s121, %s122
      %p126 = pneg %p120
      %p127 = scmp.eq.s32.totalorder %s27, 4
      %p128 = por %p126, %p127
      %p129 = scmp.ne.s32.totalorder %s121, %s124
      %p130 = scmp.eq.s32.totalorder %s27, 0
      %p131 = por %p129, %p130
      %p132 = scmp.ne.s32.totalorder %s121, %s124
      %p133 = scmp.eq.s32.totalorder %s32, 4
      %p134 = por %p132, %p133
      %p135 = scmp.ne.s32.totalorder %s124, %s125
      %p136 = scmp.eq.s32.totalorder %s32, 0
      %p137 = por %p135, %p136
      %p138 = scmp.ne.s32.totalorder %s124, %s125
      %p139 = scmp.eq.s32.totalorder %s33, 4
      %p140 = por %p138, %p139
      %p142 = scmp.ne.s32.totalorder %s125, %s141
      %p143 = scmp.eq.s32.totalorder %s33, 0
      %p144 = por %p142, %p143
      %s145 = ssub.s32 %s27, %s34
      %p146 = scmp.eq.s32.totalorder %s145, 0
      %s148 = sadd.s32 %s147, 1
      %s149 = scalar_select %p146, %s147, %s148
      %p152 = pneg %p146
      %p153 = scmp.eq.s32.totalorder %s27, 4
      %p154 = por %p152, %p153
      %p155 = scmp.ne.s32.totalorder %s147, %s150
      %p156 = scmp.eq.s32.totalorder %s27, 0
      %p157 = por %p155, %p156
      %p158 = scmp.ne.s32.totalorder %s147, %s150
      %p159 = scmp.eq.s32.totalorder %s32, 4
      %p160 = por %p158, %p159
      %p161 = scmp.ne.s32.totalorder %s150, %s151
      %p162 = scmp.eq.s32.totalorder %s32, 0
      %p163 = por %p161, %p162
      %p164 = scmp.ne.s32.totalorder %s150, %s151
      %p165 = scmp.eq.s32.totalorder %s33, 4
      %p166 = por %p164, %p165
      %p168 = scmp.ne.s32.totalorder %s151, %s167
      %p169 = scmp.eq.s32.totalorder %s33, 0
      %p170 = por %p168, %p169
      %s171 = ssub.s32 %s27, %s34
      %p172 = scmp.eq.s32.totalorder %s171, 0
      %s174 = sadd.s32 %s173, 1
      %s175 = scalar_select %p172, %s173, %s174
      %p178 = pneg %p172
      %p179 = scmp.eq.s32.totalorder %s27, 4
      %p180 = por %p178, %p179
      %p181 = scmp.ne.s32.totalorder %s173, %s176
      %p182 = scmp.eq.s32.totalorder %s27, 0
      %p183 = por %p181, %p182
      %p184 = scmp.ne.s32.totalorder %s173, %s176
      %p185 = scmp.eq.s32.totalorder %s32, 4
      %p186 = por %p184, %p185
      %p187 = scmp.ne.s32.totalorder %s176, %s177
      %p188 = scmp.eq.s32.totalorder %s32, 0
      %p189 = por %p187, %p188
      %p190 = scmp.ne.s32.totalorder %s176, %s177
      %p191 = scmp.eq.s32.totalorder %s33, 4
      %p192 = por %p190, %p191
      %p194 = scmp.ne.s32.totalorder %s177, %s193
      %p195 = scmp.eq.s32.totalorder %s33, 0
      %p196 = por %p194, %p195
      %s197 = ssub.s32 %s27, %s34
      %p198 = scmp.eq.s32.totalorder %s197, 0
      %s200 = sadd.s32 %s199, 1
      %s201 = scalar_select %p198, %s199, %s200
      %p204 = pneg %p198
      %p205 = scmp.eq.s32.totalorder %s27, 4
      %p206 = por %p204, %p205
      %p207 = scmp.ne.s32.totalorder %s199, %s202
      %p208 = scmp.eq.s32.totalorder %s27, 0
      %p209 = por %p207, %p208
      %p210 = scmp.ne.s32.totalorder %s199, %s202
      %p211 = scmp.eq.s32.totalorder %s32, 4
      %p212 = por %p210, %p211
      %p213 = scmp.ne.s32.totalorder %s202, %s203
      %p214 = scmp.eq.s32.totalorder %s32, 0
      %p215 = por %p213, %p214
      %p216 = scmp.ne.s32.totalorder %s202, %s203
      %p217 = scmp.eq.s32.totalorder %s33, 4
      %p218 = por %p216, %p217
      %p220 = scmp.ne.s32.totalorder %s203, %s219
      %p221 = scmp.eq.s32.totalorder %s33, 0
      %p222 = por %p220, %p221
      %s223 = ssub.s32 %s27, %s34
      %p224 = scmp.eq.s32.totalorder %s223, 0
      %s226 = sadd.s32 %s225, 1
      %s227 = scalar_select %p224, %s225, %s226
      %p230 = pneg %p224
      %p231 = scmp.eq.s32.totalorder %s27, 4
      %p232 = por %p230, %p231
      %p233 = scmp.ne.s32.totalorder %s225, %s228
      %p234 = scmp.eq.s32.totalorder %s27, 0
      %p235 = por %p233, %p234
      %p236 = scmp.ne.s32.totalorder %s225, %s228
      %p237 = scmp.eq.s32.totalorder %s32, 4
      %p238 = por %p236, %p237
      %p239 = scmp.ne.s32.totalorder %s228, %s229
      %p240 = scmp.eq.s32.totalorder %s32, 0
      %p241 = por %p239, %p240
      %p242 = scmp.ne.s32.totalorder %s228, %s229
      %p243 = scmp.eq.s32.totalorder %s33, 4
      %p244 = por %p242, %p243
      %p246 = scmp.ne.s32.totalorder %s229, %s245
      %p247 = scmp.eq.s32.totalorder %s33, 0
      %p248 = por %p246, %p247
      %s249 = ssub.s32 %s27, %s34
      %p250 = scmp.eq.s32.totalorder %s249, 0
      %s252 = sadd.s32 %s251, 1
      %s253 = scalar_select %p250, %s251, %s252
      %p256 = pneg %p250
      %p257 = scmp.eq.s32.totalorder %s27, 4
      %p258 = por %p256, %p257
      %p259 = scmp.ne.s32.totalorder %s251, %s254
      %p260 = scmp.eq.s32.totalorder %s27, 0
      %p261 = por %p259, %p260
      %p262 = scmp.ne.s32.totalorder %s251, %s254
      %p263 = scmp.eq.s32.totalorder %s32, 4
      %p264 = por %p262, %p263
      %p265 = scmp.ne.s32.totalorder %s254, %s255
      %p266 = scmp.eq.s32.totalorder %s32, 0
      %p267 = por %p265, %p266
      %p268 = scmp.ne.s32.totalorder %s254, %s255
      %p269 = scmp.eq.s32.totalorder %s33, 4
      %p270 = por %p268, %p269
      %p272 = scmp.ne.s32.totalorder %s255, %s271
      %p273 = scmp.eq.s32.totalorder %s33, 0
      %p274 = por %p272, %p273
      %s276 = sadd.s32 %s275, 1
      %p279 = scmp.eq.s32.totalorder %s27, 4
      %p280 = scmp.ne.s32.totalorder %s275, %s277
      %p281 = scmp.eq.s32.totalorder %s27, 0
      %p282 = por %p280, %p281
      %p283 = scmp.ne.s32.totalorder %s275, %s277
      %p284 = scmp.eq.s32.totalorder %s32, 4
      %p285 = por %p283, %p284
      %p286 = scmp.ne.s32.totalorder %s277, %s278
      %p287 = scmp.eq.s32.totalorder %s32, 0
      %p288 = por %p286, %p287
      %p289 = scmp.ne.s32.totalorder %s277, %s278
      %p290 = scmp.eq.s32.totalorder %s33, 4
      %p291 = por %p289, %p290
      %p293 = scmp.ne.s32.totalorder %s278, %s292
      %p294 = scmp.eq.s32.totalorder %s33, 0
      %p295 = por %p293, %p294
      %p296 = scmp.le.s32.totalorder 1, %s27
      %p297 = scmp.lt.s32.totalorder %s27, 6
      %p298 = pnand %p296, %p297
      %p299 = pneg %p298
      // Predicated region
      $region9: #{tpu_custom_call.1} parent=5 // pred_check
        _
      $region10: #{tpu_custom_call.1} parent=5 // pred_check_branch
        %301 = sbr.rel (%p298) target = $region12
      $region11: #{tpu_custom_call.1} parent=5 // pred_region
        %s302 = ssub.s32 %s27, 1
        // Predicated region
        $region13: #{tpu_custom_call.1} parent=11 // pred_check
          %p303 = pneg %p48
        $region14: #{tpu_custom_call.1} parent=11 // pred_check_branch
          %305 = sbr.rel (%p303) target = $region16
        $region15: #{tpu_custom_call.1} parent=11 // pred_region
          %s307 = ssub.s32 256, 256
          %308 = vsyncadd [#allocation4], %s307
          %s309 = sshll.u32 [#allocation3], 4
          %s310 = int_to_ptr.vmem [resolvable:$true] %s309
          %315 = dma.hbm_to_vmem [thread:$0]  %s0, 256, %s310, [#allocation4], 128, 128, 8
        $region16: #{tpu_custom_call.1} parent=11 // pred_fallthru
          _
        // Predicated region
        $region17: #{tpu_custom_call.1} parent=11 // pred_check
          %p316 = pneg %p69
        $region18: #{tpu_custom_call.1} parent=11 // pred_check_branch
          %318 = sbr.rel (%p316) target = $region20
        $region19: #{tpu_custom_call.1} parent=11 // pred_region
          _
        $region20: #{tpu_custom_call.1} parent=11 // pred_fallthru
          _
        // Predicated region
        $region21: #{tpu_custom_call.1} parent=11 // pred_check
          %p319 = pneg %p90
        $region22: #{tpu_custom_call.1} parent=11 // pred_check_branch
          %321 = sbr.rel (%p319) target = $region24
        $region23: #{tpu_custom_call.1} parent=11 // pred_region
          _
        $region24: #{tpu_custom_call.1} parent=11 // pred_fallthru
          _
        // Predicated region
        $region25: #{tpu_custom_call.1} parent=11 // pred_check
          %p322 = pneg %p111
        $region26: #{tpu_custom_call.1} parent=11 // pred_check_branch
          %324 = sbr.rel (%p322) target = $region28
        $region27: #{tpu_custom_call.1} parent=11 // pred_region
          _
        $region28: #{tpu_custom_call.1} parent=11 // pred_fallthru
          _
      $region12: #{tpu_custom_call.1} parent=5 // pred_fallthru
        _
      %p325 = scmp.lt.s32.totalorder %s27, 5
      // Predicated region
      $region29: #{tpu_custom_call.1} parent=5 // pred_check
        %p326 = pneg %p325
      $region30: #{tpu_custom_call.1} parent=5 // pred_check_branch
        %328 = sbr.rel (%p326) target = $region32
      $region31: #{tpu_custom_call.1} parent=5 // pred_region
        // Predicated region
        $region33: #{tpu_custom_call.1} parent=31 // pred_check
          %p329 = pneg %p131
        $region34: #{tpu_custom_call.1} parent=31 // pred_check_branch
          %331 = sbr.rel (%p329) target = $region36
        $region35: #{tpu_custom_call.1} parent=31 // pred_region
          %s332 = sand.u32 %s27, 1
          %s333 = scalar_lea.sflag [#allocation7], %s332
          %s334 = sand.u32 %s121, 1
          %s335 = smul.addr %s334, 128
          %s336 = scalar_lea.vmem [#allocation6], %s335
          %s338 = ssub.s32 2048, 2048
          %339 = vsyncadd %s333, %s338
          %s340 = smul.addr %s27, 16
          %s341 = smul.addr %s340, 128
          %s342 = scalar_lea.hbm %s4, %s341
          %s343 = sshll.u32 %s336, 4
          %s344 = int_to_ptr.vmem [resolvable:$true] %s343
          %349 = dma.hbm_to_vmem [thread:$0]  %s342, 2048, %s344, %s333, 128, 128, 8
        $region36: #{tpu_custom_call.1} parent=31 // pred_fallthru
          _
        // Predicated region
        $region37: #{tpu_custom_call.1} parent=31 // pred_check
          %p350 = pneg %p157
        $region38: #{tpu_custom_call.1} parent=31 // pred_check_branch
          %352 = sbr.rel (%p350) target = $region40
        $region39: #{tpu_custom_call.1} parent=31 // pred_region
          %s353 = sand.u32 %s27, 1
          %s354 = scalar_lea.sflag [#allocation7], %s353
          %s355 = sand.u32 %s147, 1
          %s356 = scalar_lea.vmem [#allocation8], %s355
          %s358 = ssub.s32 16, 16
          %359 = vsyncadd %s354, %s358
          %s360 = smul.addr %s27, 16
          %s361 = scalar_lea.hbm %s5, %s360
          %s363 = sshll.u32 %s356, 4
          %s364 = int_to_ptr.vmem [resolvable:$true] %s363
          %366 = dma.hbm_to_vmem [thread:$0]  %s361, 16, %s364, %s354
        $region40: #{tpu_custom_call.1} parent=31 // pred_fallthru
          _
        // Predicated region
        $region41: #{tpu_custom_call.1} parent=31 // pred_check
          %p367 = pneg %p183
        $region42: #{tpu_custom_call.1} parent=31 // pred_check_branch
          %369 = sbr.rel (%p367) target = $region44
        $region43: #{tpu_custom_call.1} parent=31 // pred_region
          %s370 = sand.u32 %s27, 1
          %s371 = scalar_lea.sflag [#allocation10], %s370
          %s372 = sand.u32 %s173, 1
          %s373 = smul.addr %s372, 128
          %s374 = scalar_lea.vmem [#allocation9], %s373
          %s376 = ssub.s32 2048, 2048
          %377 = vsyncadd %s371, %s376
          %s378 = smul.addr %s27, 16
          %s379 = smul.addr %s378, 128
          %s380 = scalar_lea.hbm %s6, %s379
          %s381 = sshll.u32 %s374, 4
          %s382 = int_to_ptr.vmem [resolvable:$true] %s381
          %387 = dma.hbm_to_vmem [thread:$0]  %s380, 2048, %s382, %s371, 128, 128, 8
        $region44: #{tpu_custom_call.1} parent=31 // pred_fallthru
          _
        // Predicated region
        $region45: #{tpu_custom_call.1} parent=31 // pred_check
          %p388 = pneg %p209
        $region46: #{tpu_custom_call.1} parent=31 // pred_check_branch
          %390 = sbr.rel (%p388) target = $region48
        $region47: #{tpu_custom_call.1} parent=31 // pred_region
          %s391 = sand.u32 %s27, 1
          %s392 = scalar_lea.sflag [#allocation10], %s391
          %s393 = sand.u32 %s199, 1
          %s394 = scalar_lea.vmem [#allocation11], %s393
          %s396 = ssub.s32 16, 16
          %397 = vsyncadd %s392, %s396
          %s398 = smul.addr %s27, 16
          %s399 = scalar_lea.hbm %s7, %s398
          %s401 = sshll.u32 %s394, 4
          %s402 = int_to_ptr.vmem [resolvable:$true] %s401
          %404 = dma.hbm_to_vmem [thread:$0]  %s399, 16, %s402, %s392
        $region48: #{tpu_custom_call.1} parent=31 // pred_fallthru
          _
        // Predicated region
        $region49: #{tpu_custom_call.1} parent=31 // pred_check
          %p405 = pneg %p235
        $region50: #{tpu_custom_call.1} parent=31 // pred_check_branch
          %407 = sbr.rel (%p405) target = $region52
        $region51: #{tpu_custom_call.1} parent=31 // pred_region
          %s408 = sand.u32 %s225, 1
          %s409 = scalar_lea.sflag [#allocation13], %s408
          %s410 = sand.u32 %s225, 1
          %s411 = scalar_lea.vmem [#allocation12], %s410
          %s413 = ssub.s32 16, 16
          %414 = vsyncadd %s409, %s413
          %s415 = smul.addr %s27, 16
          %s416 = scalar_lea.hbm %s8, %s415
          %s418 = sshll.u32 %s411, 4
          %s419 = int_to_ptr.vmem [resolvable:$true] %s418
          %421 = dma.hbm_to_vmem [thread:$0]  %s416, 16, %s419, %s409
        $region52: #{tpu_custom_call.1} parent=31 // pred_fallthru
          _
        // Predicated region
        $region53: #{tpu_custom_call.1} parent=31 // pred_check
          %p422 = pneg %p261
        $region54: #{tpu_custom_call.1} parent=31 // pred_check_branch
          %424 = sbr.rel (%p422) target = $region56
        $region55: #{tpu_custom_call.1} parent=31 // pred_region
          %p425 = scmp.lt.s32.totalorder %s27, 4
          %s426 = scalar_select %p425, %s27, 4
          %s427 = smul.addr %s426, 2
          %s428 = smul.addr %s427, 8
          %s429 = scalar_lea.vmem %s9, %s428
        $region56: #{tpu_custom_call.1} parent=31 // pred_fallthru
          _
      $region32: #{tpu_custom_call.1} parent=5 // pred_fallthru
        _
      %p430 = scmp.le.s32.totalorder 1, %s27
      %p431 = scmp.lt.s32.totalorder %s27, 6
      %p432 = pnand %p430, %p431
      %p433 = pneg %p432
      // Predicated region
      $region57: #{tpu_custom_call.1} parent=5 // pred_check
        _
      $region58: #{tpu_custom_call.1} parent=5 // pred_check_branch
        %435 = sbr.rel (%p432) target = $region60
      $region59: #{tpu_custom_call.1} parent=5 // pred_region
        %s436 = ssub.s32 %s27, 1
        // Predicated region
        $region61: #{tpu_custom_call.1} parent=59 // pred_check
          %p437 = pneg %p48
        $region62: #{tpu_custom_call.1} parent=59 // pred_check_branch
          %439 = sbr.rel (%p437) target = $region64
        $region63: #{tpu_custom_call.1} parent=59 // pred_region
          %440 = dma.done [#allocation4], 256
        $region64: #{tpu_custom_call.1} parent=59 // pred_fallthru
          _
        %s441 = sand.u32 %s32, 1
        %s442 = scalar_lea.sflag [#allocation7], %s441
        %s443 = sand.u32 %s124, 1
        %s444 = smul.addr %s443, 128
        %s445 = scalar_lea.vmem [#allocation6], %s444
        // Predicated region
        $region65: #{tpu_custom_call.1} parent=59 // pred_check
          %p446 = pneg %p137
        $region66: #{tpu_custom_call.1} parent=59 // pred_check_branch
          %448 = sbr.rel (%p446) target = $region68
        $region67: #{tpu_custom_call.1} parent=59 // pred_region
          %449 = dma.done %s442, 2048
        $region68: #{tpu_custom_call.1} parent=59 // pred_fallthru
          _
        %s450 = sand.u32 %s32, 1
        %s451 = scalar_lea.sflag [#allocation7], %s450
        %s452 = sand.u32 %s150, 1
        %s453 = scalar_lea.vmem [#allocation8], %s452
        // Predicated region
        $region69: #{tpu_custom_call.1} parent=59 // pred_check
          %p454 = pneg %p163
        $region70: #{tpu_custom_call.1} parent=59 // pred_check_branch
          %456 = sbr.rel (%p454) target = $region72
        $region71: #{tpu_custom_call.1} parent=59 // pred_region
          %457 = dma.done %s451, 16
        $region72: #{tpu_custom_call.1} parent=59 // pred_fallthru
          _
        %s458 = sand.u32 %s32, 1
        %s459 = scalar_lea.sflag [#allocation10], %s458
        %s460 = sand.u32 %s176, 1
        %s461 = smul.addr %s460, 128
        %s462 = scalar_lea.vmem [#allocation9], %s461
        // Predicated region
        $region73: #{tpu_custom_call.1} parent=59 // pred_check
          %p463 = pneg %p189
        $region74: #{tpu_custom_call.1} parent=59 // pred_check_branch
          %465 = sbr.rel (%p463) target = $region76
        $region75: #{tpu_custom_call.1} parent=59 // pred_region
          %466 = dma.done %s459, 2048
        $region76: #{tpu_custom_call.1} parent=59 // pred_fallthru
          _
        %s467 = sand.u32 %s32, 1
        %s468 = scalar_lea.sflag [#allocation10], %s467
        %s469 = sand.u32 %s202, 1
        %s470 = scalar_lea.vmem [#allocation11], %s469
        // Predicated region
        $region77: #{tpu_custom_call.1} parent=59 // pred_check
          %p471 = pneg %p215
        $region78: #{tpu_custom_call.1} parent=59 // pred_check_branch
          %473 = sbr.rel (%p471) target = $region80
        $region79: #{tpu_custom_call.1} parent=59 // pred_region
          %474 = dma.done %s468, 16
        $region80: #{tpu_custom_call.1} parent=59 // pred_fallthru
          _
        %s475 = sand.u32 %s228, 1
        %s476 = scalar_lea.sflag [#allocation13], %s475
        %s477 = sand.u32 %s228, 1
        %s478 = scalar_lea.vmem [#allocation12], %s477
        // Predicated region
        $region81: #{tpu_custom_call.1} parent=59 // pred_check
          %p479 = pneg %p241
        $region82: #{tpu_custom_call.1} parent=59 // pred_check_branch
          %481 = sbr.rel (%p479) target = $region84
        $region83: #{tpu_custom_call.1} parent=59 // pred_region
          %482 = dma.done %s476, 16
        $region84: #{tpu_custom_call.1} parent=59 // pred_fallthru
          _
        %p483 = pneg %p48
        %p484 = pneg %p45
        %p485 = pneg %p69
        %p486 = pneg %p66
        %p487 = pneg %p90
        %p488 = pneg %p87
        %p489 = pneg %p111
        %p490 = pneg %p108
        %s491 = sand.u32 %s32, 1
        %s492 = scalar_lea.sflag [#allocation7], %s491
        %s493 = sand.u32 %s124, 1
        %s494 = smul.addr %s493, 128
        %s495 = scalar_lea.vmem [#allocation6], %s494
        %p496 = pneg %p137
        %p497 = pneg %p134
        %s498 = sand.u32 %s32, 1
        %s499 = scalar_lea.sflag [#allocation7], %s498
        %s500 = sand.u32 %s150, 1
        %s501 = scalar_lea.vmem [#allocation8], %s500
        %p502 = pneg %p163
        %p503 = pneg %p160
        %s504 = sand.u32 %s32, 1
        %s505 = scalar_lea.sflag [#allocation10], %s504
        %s506 = sand.u32 %s176, 1
        %s507 = smul.addr %s506, 128
        %s508 = scalar_lea.vmem [#allocation9], %s507
        %p509 = pneg %p189
        %p510 = pneg %p186
        %s511 = sand.u32 %s32, 1
        %s512 = scalar_lea.sflag [#allocation10], %s511
        %s513 = sand.u32 %s202, 1
        %s514 = scalar_lea.vmem [#allocation11], %s513
        %p515 = pneg %p215
        %p516 = pneg %p212
        %s517 = sand.u32 %s228, 1
        %s518 = scalar_lea.sflag [#allocation13], %s517
        %s519 = sand.u32 %s228, 1
        %s520 = scalar_lea.vmem [#allocation12], %s519
        %p521 = pneg %p241
        %p522 = pneg %p238
        %p523 = scmp.lt.s32.totalorder %s32, 4
        %s524 = scalar_select %p523, %s32, 4
        %s525 = smul.addr %s524, 2
        %s526 = smul.addr %s525, 8
        %s527 = scalar_lea.vmem %s9, %s526
        %p528 = pneg %p267
        %p529 = pneg %p264
        %p530 = pneg %p288
        %p531 = pneg %p285
        %p532 = scmp.lt.s32.totalorder %s32, 4
        %s533 = scalar_select %p532, %s32, 4
        %s534 = smul.addr %s533, 2
        %s535 = smul.addr %s534, 8
        %s536 = scalar_lea.vmem %s9, %s535
        %p537 = scmp.eq.s32.totalorder %s32, 0
        // Predicated region
        $region85: #{tpu_custom_call.1} parent=59 // pred_check
          %p538 = pneg %p537
        $region86: #{tpu_custom_call.1} parent=59 // pred_check_branch
          %540 = sbr.rel (%p538) target = $region88
        $region87: #{tpu_custom_call.1} parent=59 // pred_region
          %v541 = vld [vmem:[%s2] sm:$0xff]
          %v542 = vld [vmem:[%s2 + $0x8] sm:$0xff]
          %v543 = vld [vmem:[%s2 + $0x10] sm:$0xff]
          %v544 = vld [vmem:[%s2 + $0x18] sm:$0xff]
          %v545 = vld [vmem:[#allocation3] sm:$0xff]
          %v546 = vld [vmem:[#allocation3 + $0x8] sm:$0xff]
          %v547 = vld [vmem:[%s1] sm:$0xff]
          %v548 = vld [vmem:[%s1 + $0x8] sm:$0xff]
          %v549 = vld [vmem:[%s1 + $0x10] sm:$0xff]
          %v550 = vld [vmem:[%s1 + $0x18] sm:$0xff]
          %vm551 = vcmask 130048
          %v553 = vsel %vm551, %v541, 0
          %v556 = vsel %vm551, %v542, 0
          %v559 = vsel %vm551, %v543, 0
          %v562 = vsel %vm551, %v544, 0
          %564 = vmatprep.subr.mxu0 0.0
          %565 = vmatpush1.msra.mxu0 0.0
          %566 = vmatprep.subr.mxu0 0.0
          %567 = vmatpush1.msra.mxu0 0.0
          %568 = vmatprep.subr.mxu0 0.0
          %569 = vmatpush1.msra.mxu0 0.0
          %570 = vmatprep.subr.mxu0 0.0
          %571 = vmatpush1.msra.mxu0 0.0
          %572 = vmatprep.subr.mxu0 0.0
          %573 = vmatpush1.msra.mxu0 0.0
          %574 = vmatprep.subr.mxu0 0.0
          %575 = vmatpush1.msra.mxu0 0.0
          %576 = vmatprep.subr.mxu0 0.0
          %577 = vmatpush1.msra.mxu0 0.0
          %578 = vmatprep.subr.mxu0 0.0
          %579 = vmatpush1.msra.mxu0 0.0
          %580 = vmatprep.subr.mxu0 0.0
          %581 = vmatpush1.msra.mxu0 0.0
          %582 = vmatprep.subr.mxu0 0.0
          %583 = vmatpush1.msra.mxu0 0.0
          %584 = vmatprep.subr.mxu0 0.0
          %585 = vmatpush1.msra.mxu0 0.0
          %586 = vmatprep.subr.mxu0 0.0
          %587 = vmatpush1.msra.mxu0 0.0
          %588 = vmatprep.subr.mxu0 0.0
          %589 = vmatpush1.msra.mxu0 0.0
          %590 = vmatprep.subr.mxu0 0.0
          %591 = vmatpush1.msra.mxu0 0.0
          %592 = vmatprep.subr.mxu0 0.0
          %593 = vmatpush1.msra.mxu0 %v546
          %594 = vmatprep.subr.mxu0 0.0
          %595 = vmatpush1.msra.mxu0 %v545
          %596 = vmatprep.subr.mxu0 0.0
          %597 = vmatpush2.msra.mxu0 0.0
          %598 = vmatprep.subr.mxu0 0.0
          %599 = vmatpush2.msra.mxu0 0.0
          %600 = vmatprep.subr.mxu0 0.0
          %601 = vmatpush2.msra.mxu0 0.0
          %602 = vmatprep.subr.mxu0 0.0
          %603 = vmatpush2.msra.mxu0 0.0
          %604 = vmatprep.subr.mxu0 0.0
          %605 = vmatpush2.msra.mxu0 0.0
          %606 = vmatprep.subr.mxu0 0.0
          %607 = vmatpush2.msra.mxu0 0.0
          %608 = vmatprep.subr.mxu0 0.0
          %609 = vmatpush2.msra.mxu0 0.0
          %610 = vmatprep.subr.mxu0 0.0
          %611 = vmatpush2.msra.mxu0 0.0
          %612 = vmatprep.subr.mxu0 0.0
          %613 = vmatpush2.msra.mxu0 0.0
          %614 = vmatprep.subr.mxu0 0.0
          %615 = vmatpush2.msra.mxu0 0.0
          %616 = vmatprep.subr.mxu0 0.0
          %617 = vmatpush2.msra.mxu0 0.0
          %618 = vmatprep.subr.mxu0 0.0
          %619 = vmatpush2.msra.mxu0 0.0
          %620 = vmatprep.subr.mxu0 0.0
          %621 = vmatpush2.msra.mxu0 0.0
          %622 = vmatprep.subr.mxu0 0.0
          %623 = vmatpush2.msra.mxu0 0.0
          %624 = vmatprep.subr.mxu0 0.0
          %625 = vmatpush2.msra.mxu0 0.0
          %626 = vmatprep.subr.mxu0 0.0
          %627 = vmatpush2.msra.mxu0 0.0
          %628 = vmatprep.mubr.f32.mxu0 0.0
          %629 = vmatmul.mubr.f32.gmra.mxu0 %v553
          %v630 = vpop.f32.mrf.mxu0
          %v631 = vadd.f32 %v547, %v630
          %v632 = vpop.f32.mrf.mxu0
          %633 = vmatprep.mubr.f32.mxu0 0.0
          %634 = vmatmul.mubr.f32.gmra.mxu0 %v556
          %v635 = vpop.f32.mrf.mxu0
          %v636 = vadd.f32 %v548, %v635
          %v637 = vpop.f32.mrf.mxu0
          %638 = vmatprep.mubr.f32.mxu0 0.0
          %639 = vmatmul.mubr.f32.gmra.mxu0 %v559
          %v640 = vpop.f32.mrf.mxu0
          %v641 = vadd.f32 %v549, %v640
          %v642 = vpop.f32.mrf.mxu0
          %643 = vmatprep.mubr.f32.mxu0 0.0
          %644 = vmatmul.mubr.f32.gmra.mxu0 %v562
          %v645 = vpop.f32.mrf.mxu0
          %v646 = vadd.f32 %v550, %v645
          %v647 = vpop.f32.mrf.mxu0
          %648 = vdwg.mxu0
          %v649 = vmax.f32 %v631, 0.0
          %v650 = vmax.f32 %v636, 0.0
          %v651 = vmax.f32 %v641, 0.0
          %v652 = vmax.f32 %v646, 0.0
          %v653 = vld [vmem:[%s3] sm:$0xff]
          %v654 = vld [vmem:[%s3 + $0x8] sm:$0xff]
          %v655 = vld [vmem:[%s3 + $0x10] sm:$0xff]
          %v656 = vld [vmem:[%s3 + $0x18] sm:$0xff]
          %657 = vxpose.xlu0.b32.start [1/16] %v653, 128
          %658 = vxpose.xlu0.b32.cont [2/16] %v654, 128
          %659 = vxpose.xlu0.b32.cont [3/16] %v655, 128
          %660 = vxpose.xlu0.b32.cont [4/16] %v656, 128
          %661 = vxpose.xlu0.b32.cont [5/16] 0.0, 128
          %662 = vxpose.xlu0.b32.cont [6/16] 0.0, 128
          %663 = vxpose.xlu0.b32.cont [7/16] 0.0, 128
          %664 = vxpose.xlu0.b32.cont [8/16] 0.0, 128
          %665 = vxpose.xlu0.b32.cont [9/16] 0.0, 128
          %666 = vxpose.xlu0.b32.cont [10/16] 0.0, 128
          %667 = vxpose.xlu0.b32.cont [11/16] 0.0, 128
          %668 = vxpose.xlu0.b32.cont [12/16] 0.0, 128
          %669 = vxpose.xlu0.b32.cont [13/16] 0.0, 128
          %670 = vxpose.xlu0.b32.cont [14/16] 0.0, 128
          %671 = vxpose.xlu0.b32.cont [15/16] 0.0, 128
          %672 = vxpose.xlu0.b32.end [16/16] 0.0, 128
          %v673 = vpop.trf.xlu0
          %v674 = vpop.trf.xlu0
          %v675 = vpop.trf.xlu0
          %v676 = vpop.trf.xlu0
          %v677 = vpop.trf.xlu0
          %v678 = vpop.trf.xlu0
          %v679 = vpop.trf.xlu0
          %v680 = vpop.trf.xlu0
          %v681 = vpop.trf.xlu0
          %v682 = vpop.trf.xlu0
          %v683 = vpop.trf.xlu0
          %v684 = vpop.trf.xlu0
          %v685 = vpop.trf.xlu0
          %v686 = vpop.trf.xlu0
          %v687 = vpop.trf.xlu0
          %v688 = vpop.trf.xlu0
          %vm689 = vcmask 261120
          %v691 = vsel %vm689, %v673, 0
          %v694 = vsel %vm689, %v674, 0
          %696 = vmatprep.subr.mxu0 0.0
          %697 = vmatpush1.msra.mxu0 0.0
          %698 = vmatprep.subr.mxu0 0.0
          %699 = vmatpush1.msra.mxu0 0.0
          %700 = vmatprep.subr.mxu0 0.0
          %701 = vmatpush1.msra.mxu0 0.0
          %702 = vmatprep.subr.mxu0 0.0
          %703 = vmatpush1.msra.mxu0 0.0
          %704 = vmatprep.subr.mxu0 0.0
          %705 = vmatpush1.msra.mxu0 0.0
          %706 = vmatprep.subr.mxu0 0.0
          %707 = vmatpush1.msra.mxu0 0.0
          %708 = vmatprep.subr.mxu0 0.0
          %709 = vmatpush1.msra.mxu0 0.0
          %710 = vmatprep.subr.mxu0 0.0
          %711 = vmatpush1.msra.mxu0 0.0
          %712 = vmatprep.subr.mxu0 0.0
          %713 = vmatpush1.msra.mxu0 0.0
          %714 = vmatprep.subr.mxu0 0.0
          %715 = vmatpush1.msra.mxu0 0.0
          %716 = vmatprep.subr.mxu0 0.0
          %717 = vmatpush1.msra.mxu0 0.0
          %718 = vmatprep.subr.mxu0 0.0
          %719 = vmatpush1.msra.mxu0 0.0
          %720 = vmatprep.subr.mxu0 0.0
          %721 = vmatpush1.msra.mxu0 %v652
          %722 = vmatprep.subr.mxu0 0.0
          %723 = vmatpush1.msra.mxu0 %v651
          %724 = vmatprep.subr.mxu0 0.0
          %725 = vmatpush1.msra.mxu0 %v650
          %726 = vmatprep.subr.mxu0 0.0
          %727 = vmatpush1.msra.mxu0 %v649
          %728 = vmatprep.subr.mxu0 0.0
          %729 = vmatpush2.msra.mxu0 0.0
          %730 = vmatprep.subr.mxu0 0.0
          %731 = vmatpush2.msra.mxu0 0.0
          %732 = vmatprep.subr.mxu0 0.0
          %733 = vmatpush2.msra.mxu0 0.0
          %734 = vmatprep.subr.mxu0 0.0
          %735 = vmatpush2.msra.mxu0 0.0
          %736 = vmatprep.subr.mxu0 0.0
          %737 = vmatpush2.msra.mxu0 0.0
          %738 = vmatprep.subr.mxu0 0.0
          %739 = vmatpush2.msra.mxu0 0.0
          %740 = vmatprep.subr.mxu0 0.0
          %741 = vmatpush2.msra.mxu0 0.0
          %742 = vmatprep.subr.mxu0 0.0
          %743 = vmatpush2.msra.mxu0 0.0
          %744 = vmatprep.subr.mxu0 0.0
          %745 = vmatpush2.msra.mxu0 0.0
          %746 = vmatprep.subr.mxu0 0.0
          %747 = vmatpush2.msra.mxu0 0.0
          %748 = vmatprep.subr.mxu0 0.0
          %749 = vmatpush2.msra.mxu0 0.0
          %750 = vmatprep.subr.mxu0 0.0
          %751 = vmatpush2.msra.mxu0 0.0
          %752 = vmatprep.subr.mxu0 0.0
          %753 = vmatpush2.msra.mxu0 0.0
          %754 = vmatprep.subr.mxu0 0.0
          %755 = vmatpush2.msra.mxu0 0.0
          %756 = vmatprep.subr.mxu0 0.0
          %757 = vmatpush2.msra.mxu0 0.0
          %758 = vmatprep.subr.mxu0 0.0
          %759 = vmatpush2.msra.mxu0 0.0
          %760 = vmatprep.mubr.f32.mxu0 0.0
          %761 = vmatmul.mubr.f32.gmra.mxu0 %v691
          %v762 = vpop.f32.mrf.mxu0
          %v763 = vadd.f32 0.0, %v762
          %v764 = vpop.f32.mrf.mxu0
          %765 = vmatprep.mubr.f32.mxu0 0.0
          %766 = vmatmul.mubr.f32.gmra.mxu0 %v694
          %v767 = vpop.f32.mrf.mxu0
          %v768 = vadd.f32 0.0, %v767
          %v769 = vpop.f32.mrf.mxu0
          %770 = vdwg.mxu0
          %771 = vst [vmem:[#allocation2] sm:$0xff] %v763
          %772 = vst [vmem:[#allocation2 + $0x8] sm:$0xff] %v768
        $region88: #{tpu_custom_call.1} parent=59 // pred_fallthru
          _
        %v773 = vld [vmem:[#allocation3] sm:$0xff]
        %v774 = vld [vmem:[#allocation3 + $0x8] sm:$0xff]
        %v775 = vld [vmem:[%s478] sm:$0x1]
        %v777 = vlaneseq
        %v778 = vshrl.u32 %v777, 7
        %v779 = vsub.s32 0, %v778
        %v780 = vrot.slane %v775, %v779
        %v782 = vmul.f32 %v780, %v773
        %v783 = vmul.f32 %v780, %v774
        %v784 = vld [vmem:[#allocation2] sm:$0xff]
        %v785 = vld [vmem:[#allocation2 + $0x8] sm:$0xff]
        %v786 = vadd.f32 %v782, %v784
        %v787 = vadd.f32 %v783, %v785
        %v788 = vld [vmem:[%s445] sm:$0xff]
        %v789 = vld [vmem:[%s445 + $0x8] sm:$0xff]
        %v790 = vld [vmem:[%s445 + $0x10] sm:$0xff]
        %v791 = vld [vmem:[%s445 + $0x18] sm:$0xff]
        %v792 = vld [vmem:[%s445 + $0x20] sm:$0xff]
        %v793 = vld [vmem:[%s445 + $0x28] sm:$0xff]
        %v794 = vld [vmem:[%s445 + $0x30] sm:$0xff]
        %v795 = vld [vmem:[%s445 + $0x38] sm:$0xff]
        %v796 = vld [vmem:[%s445 + $0x40] sm:$0xff]
        %v797 = vld [vmem:[%s445 + $0x48] sm:$0xff]
        %v798 = vld [vmem:[%s445 + $0x50] sm:$0xff]
        %v799 = vld [vmem:[%s445 + $0x58] sm:$0xff]
        %v800 = vld [vmem:[%s445 + $0x60] sm:$0xff]
        %v801 = vld [vmem:[%s445 + $0x68] sm:$0xff]
        %v802 = vld [vmem:[%s445 + $0x70] sm:$0xff]
        %v803 = vld [vmem:[%s445 + $0x78] sm:$0xff]
        %v804 = vld [vmem:[%s453] sm:$0x1]
        %v806 = vlaneseq
        %v807 = vshrl.u32 %v806, 7
        %v808 = vsub.s32 0, %v807
        %v809 = vrot.slane %v804, %v808
        %811 = vmatprep.subr.mxu0 0.0
        %812 = vmatpush1.msra.mxu0 %v803
        %813 = vmatprep.subr.mxu0 0.0
        %814 = vmatpush1.msra.mxu0 %v802
        %815 = vmatprep.subr.mxu0 0.0
        %816 = vmatpush1.msra.mxu0 %v801
        %817 = vmatprep.subr.mxu0 0.0
        %818 = vmatpush1.msra.mxu0 %v800
        %819 = vmatprep.subr.mxu0 0.0
        %820 = vmatpush1.msra.mxu0 %v799
        %821 = vmatprep.subr.mxu0 0.0
        %822 = vmatpush1.msra.mxu0 %v798
        %823 = vmatprep.subr.mxu0 0.0
        %824 = vmatpush1.msra.mxu0 %v797
        %825 = vmatprep.subr.mxu0 0.0
        %826 = vmatpush1.msra.mxu0 %v796
        %827 = vmatprep.subr.mxu0 0.0
        %828 = vmatpush1.msra.mxu0 %v795
        %829 = vmatprep.subr.mxu0 0.0
        %830 = vmatpush1.msra.mxu0 %v794
        %831 = vmatprep.subr.mxu0 0.0
        %832 = vmatpush1.msra.mxu0 %v793
        %833 = vmatprep.subr.mxu0 0.0
        %834 = vmatpush1.msra.mxu0 %v792
        %835 = vmatprep.subr.mxu0 0.0
        %836 = vmatpush1.msra.mxu0 %v791
        %837 = vmatprep.subr.mxu0 0.0
        %838 = vmatpush1.msra.mxu0 %v790
        %839 = vmatprep.subr.mxu0 0.0
        %840 = vmatpush1.msra.mxu0 %v789
        %841 = vmatprep.subr.mxu0 0.0
        %842 = vmatpush1.msra.mxu0 %v788
        %843 = vmatprep.subr.mxu0 0.0
        %844 = vmatpush2.msra.mxu0 0.0
        %845 = vmatprep.subr.mxu0 0.0
        %846 = vmatpush2.msra.mxu0 0.0
        %847 = vmatprep.subr.mxu0 0.0
        %848 = vmatpush2.msra.mxu0 0.0
        %849 = vmatprep.subr.mxu0 0.0
        %850 = vmatpush2.msra.mxu0 0.0
        %851 = vmatprep.subr.mxu0 0.0
        %852 = vmatpush2.msra.mxu0 0.0
        %853 = vmatprep.subr.mxu0 0.0
        %854 = vmatpush2.msra.mxu0 0.0
        %855 = vmatprep.subr.mxu0 0.0
        %856 = vmatpush2.msra.mxu0 0.0
        %857 = vmatprep.subr.mxu0 0.0
        %858 = vmatpush2.msra.mxu0 0.0
        %859 = vmatprep.subr.mxu0 0.0
        %860 = vmatpush2.msra.mxu0 0.0
        %861 = vmatprep.subr.mxu0 0.0
        %862 = vmatpush2.msra.mxu0 0.0
        %863 = vmatprep.subr.mxu0 0.0
        %864 = vmatpush2.msra.mxu0 0.0
        %865 = vmatprep.subr.mxu0 0.0
        %866 = vmatpush2.msra.mxu0 0.0
        %867 = vmatprep.subr.mxu0 0.0
        %868 = vmatpush2.msra.mxu0 0.0
        %869 = vmatprep.subr.mxu0 0.0
        %870 = vmatpush2.msra.mxu0 0.0
        %871 = vmatprep.subr.mxu0 0.0
        %872 = vmatpush2.msra.mxu0 0.0
        %873 = vmatprep.subr.mxu0 0.0
        %874 = vmatpush2.msra.mxu0 0.0
        %875 = vmatprep.mubr.f32.mxu0 0.0
        %876 = vmatmul.mubr.f32.gmra.mxu0 %v786
        %v877 = vpop.f32.mrf.mxu0
        %v878 = vadd.f32 %v809, %v877
        %v879 = vpop.f32.mrf.mxu0
        %880 = vmatprep.mubr.f32.mxu0 0.0
        %881 = vmatmul.mubr.f32.gmra.mxu0 %v787
        %v882 = vpop.f32.mrf.mxu0
        %v883 = vadd.f32 %v809, %v882
        %v884 = vpop.f32.mrf.mxu0
        %885 = vdwg.mxu0
        %v886 = vmax.f32 %v878, 0.0
        %v887 = vmax.f32 %v883, 0.0
        %v888 = vld [vmem:[%s462] sm:$0xff]
        %v889 = vld [vmem:[%s462 + $0x8] sm:$0xff]
        %v890 = vld [vmem:[%s462 + $0x10] sm:$0xff]
        %v891 = vld [vmem:[%s462 + $0x18] sm:$0xff]
        %v892 = vld [vmem:[%s462 + $0x20] sm:$0xff]
        %v893 = vld [vmem:[%s462 + $0x28] sm:$0xff]
        %v894 = vld [vmem:[%s462 + $0x30] sm:$0xff]
        %v895 = vld [vmem:[%s462 + $0x38] sm:$0xff]
        %v896 = vld [vmem:[%s462 + $0x40] sm:$0xff]
        %v897 = vld [vmem:[%s462 + $0x48] sm:$0xff]
        %v898 = vld [vmem:[%s462 + $0x50] sm:$0xff]
        %v899 = vld [vmem:[%s462 + $0x58] sm:$0xff]
        %v900 = vld [vmem:[%s462 + $0x60] sm:$0xff]
        %v901 = vld [vmem:[%s462 + $0x68] sm:$0xff]
        %v902 = vld [vmem:[%s462 + $0x70] sm:$0xff]
        %v903 = vld [vmem:[%s462 + $0x78] sm:$0xff]
        %v904 = vld [vmem:[%s470] sm:$0x1]
        %v906 = vlaneseq
        %v907 = vshrl.u32 %v906, 7
        %v908 = vsub.s32 0, %v907
        %v909 = vrot.slane %v904, %v908
        %911 = vmatprep.subr.mxu0 0.0
        %912 = vmatpush1.msra.mxu0 %v903
        %913 = vmatprep.subr.mxu0 0.0
        %914 = vmatpush1.msra.mxu0 %v902
        %915 = vmatprep.subr.mxu0 0.0
        %916 = vmatpush1.msra.mxu0 %v901
        %917 = vmatprep.subr.mxu0 0.0
        %918 = vmatpush1.msra.mxu0 %v900
        %919 = vmatprep.subr.mxu0 0.0
        %920 = vmatpush1.msra.mxu0 %v899
        %921 = vmatprep.subr.mxu0 0.0
        %922 = vmatpush1.msra.mxu0 %v898
        %923 = vmatprep.subr.mxu0 0.0
        %924 = vmatpush1.msra.mxu0 %v897
        %925 = vmatprep.subr.mxu0 0.0
        %926 = vmatpush1.msra.mxu0 %v896
        %927 = vmatprep.subr.mxu0 0.0
        %928 = vmatpush1.msra.mxu0 %v895
        %929 = vmatprep.subr.mxu0 0.0
        %930 = vmatpush1.msra.mxu0 %v894
        %931 = vmatprep.subr.mxu0 0.0
        %932 = vmatpush1.msra.mxu0 %v893
        %933 = vmatprep.subr.mxu0 0.0
        %934 = vmatpush1.msra.mxu0 %v892
        %935 = vmatprep.subr.mxu0 0.0
        %936 = vmatpush1.msra.mxu0 %v891
        %937 = vmatprep.subr.mxu0 0.0
        %938 = vmatpush1.msra.mxu0 %v890
        %939 = vmatprep.subr.mxu0 0.0
        %940 = vmatpush1.msra.mxu0 %v889
        %941 = vmatprep.subr.mxu0 0.0
        %942 = vmatpush1.msra.mxu0 %v888
        %943 = vmatprep.subr.mxu0 0.0
        %944 = vmatpush2.msra.mxu0 0.0
        %945 = vmatprep.subr.mxu0 0.0
        %946 = vmatpush2.msra.mxu0 0.0
        %947 = vmatprep.subr.mxu0 0.0
        %948 = vmatpush2.msra.mxu0 0.0
        %949 = vmatprep.subr.mxu0 0.0
        %950 = vmatpush2.msra.mxu0 0.0
        %951 = vmatprep.subr.mxu0 0.0
        %952 = vmatpush2.msra.mxu0 0.0
        %953 = vmatprep.subr.mxu0 0.0
        %954 = vmatpush2.msra.mxu0 0.0
        %955 = vmatprep.subr.mxu0 0.0
        %956 = vmatpush2.msra.mxu0 0.0
        %957 = vmatprep.subr.mxu0 0.0
        %958 = vmatpush2.msra.mxu0 0.0
        %959 = vmatprep.subr.mxu0 0.0
        %960 = vmatpush2.msra.mxu0 0.0
        %961 = vmatprep.subr.mxu0 0.0
        %962 = vmatpush2.msra.mxu0 0.0
        %963 = vmatprep.subr.mxu0 0.0
        %964 = vmatpush2.msra.mxu0 0.0
        %965 = vmatprep.subr.mxu0 0.0
        %966 = vmatpush2.msra.mxu0 0.0
        %967 = vmatprep.subr.mxu0 0.0
        %968 = vmatpush2.msra.mxu0 0.0
        %969 = vmatprep.subr.mxu0 0.0
        %970 = vmatpush2.msra.mxu0 0.0
        %971 = vmatprep.subr.mxu0 0.0
        %972 = vmatpush2.msra.mxu0 0.0
        %973 = vmatprep.subr.mxu0 0.0
        %974 = vmatpush2.msra.mxu0 0.0
        %975 = vmatprep.mubr.f32.mxu0 0.0
        %976 = vmatmul.mubr.f32.gmra.mxu0 %v886
        %v977 = vpop.f32.mrf.mxu0
        %v978 = vadd.f32 %v909, %v977
        %v979 = vpop.f32.mrf.mxu0
        %980 = vmatprep.mubr.f32.mxu0 0.0
        %981 = vmatmul.mubr.f32.gmra.mxu0 %v887
        %v982 = vpop.f32.mrf.mxu0
        %v983 = vadd.f32 %v909, %v982
        %v984 = vpop.f32.mrf.mxu0
        %985 = vdwg.mxu0
        %v986 = vmax.f32 %v978, 0.0
        %v987 = vmax.f32 %v983, 0.0
        %v988 = vld [vmem:[%s536] sm:$0xff]
        %v989 = vld [vmem:[%s536 + $0x8] sm:$0xff]
        %v990 = vmul.f32 %v986, %v988
        %v991 = vmul.f32 %v987, %v989
        %992 = vst [vmem:[#allocation14] sm:$0xff] %v990
        %993 = vst [vmem:[#allocation14 + $0x8] sm:$0xff] %v991
        // Predicated region
        $region89: #{tpu_custom_call.1} parent=59 // pred_check
          %p994 = pneg %p285
        $region90: #{tpu_custom_call.1} parent=59 // pred_check_branch
          %996 = sbr.rel (%p994) target = $region92
        $region91: #{tpu_custom_call.1} parent=59 // pred_region
          %s998 = ssub.s32 256, 256
          %999 = vsyncadd [#allocation5], %s998
          %s1000 = sshll.u32 [#allocation14], 4
          %s1001 = int_to_ptr.vmem [resolvable:$true] %s1000
          %1006 = dma.vmem_to_hbm [thread:$0]  %s1001, 256, %s10, [#allocation5], 128, 128, 8
        $region92: #{tpu_custom_call.1} parent=59 // pred_fallthru
          _
        // Predicated region
        $region93: #{tpu_custom_call.1} parent=59 // pred_check
          %p1007 = pneg %p285
        $region94: #{tpu_custom_call.1} parent=59 // pred_check_branch
          %1009 = sbr.rel (%p1007) target = $region96
        $region95: #{tpu_custom_call.1} parent=59 // pred_region
          %1010 = dma.done [#allocation5], 256
        $region96: #{tpu_custom_call.1} parent=59 // pred_fallthru
          _
      $region60: #{tpu_custom_call.1} parent=5 // pred_fallthru
        _
      %p1011 = scmp.le.s32.totalorder 2, %s27
      // Predicated region
      $region97: #{tpu_custom_call.1} parent=5 // pred_check
        %p1012 = pneg %p1011
      $region98: #{tpu_custom_call.1} parent=5 // pred_check_branch
        %1014 = sbr.rel (%p1012) target = $region100
      $region99: #{tpu_custom_call.1} parent=5 // pred_region
        %s1015 = ssub.s32 %s27, 2
      $region100: #{tpu_custom_call.1} parent=5 // pred_fallthru
        _
    $region6: #{tpu_custom_call.1} parent=1 // loop_footer
      %s31 = sadd.s32 1, %s27
    $region7: #{tpu_custom_call.1} parent=1 // loop_footer_branch
      %26 = sbr.rel target = $region3
    $region8: #{tpu_custom_call.1} parent=1 // loop_exit
      _
    %1016 = vsyncpa [#allocation4], 1
    %s1017 = scalar_lea.sflag [#allocation4], 1
    %1018 = vsyncpa %s1017, 1
    %1019 = vsyncpa [#allocation7], 1
    %s1020 = scalar_lea.sflag [#allocation7], 1
    %1021 = vsyncpa %s1020, 1
    %1022 = vsyncpa [#allocation10], 1
    %s1023 = scalar_lea.sflag [#allocation10], 1
    %1024 = vsyncpa %s1023, 1
    %1025 = vsyncpa [#allocation13], 1
    %s1026 = scalar_lea.sflag [#allocation13], 1
    %1027 = vsyncpa %s1026, 1
    %1028 = vsyncpa [#allocation5], 1
    %s1029 = scalar_lea.sflag [#allocation5], 1
    %1030 = vsyncpa %s1029, 1

</llo_original>
